<compile_context>
chip_gen: v5e
topology: v5e:2x2
jax: 0.10.0
libtpu: 0.0.40
codegen_flags: <defaults>
</compile_context>

<pallas_src>
import jax
import jax.numpy as jnp
from jax.experimental import pallas as pl
from jax.experimental.pallas import tpu as pltpu


def _fi_interaction_kernel(k_ref, r_ref, x0_ref, xi_ref, o_ref):
    """One batch tile of: out = V_i * (V_0 @ kron(W.T, I_D) + r_row).

    k_ref:  (FD, FD) kron(interaction_weight.T, I_D), resident across the grid
    r_ref:  (1, FD)  res_weight broadcast along the flattened F*D axis (f32)
    x0_ref: (TB, FD) V_0 batch tile (natural layout, fields*embed flattened)
    xi_ref: (TB, FD) V_i batch tile
    o_ref:  (TB, FD) output tile
    """
    x0 = x0_ref[...].astype(k_ref.dtype)          # match MXU operand dtype
    inter = jnp.dot(x0, k_ref[...],
                    preferred_element_type=jnp.float32)    # (TB, FD), f32 acc
    xi = xi_ref[...].astype(jnp.float32)
    r = r_ref[...]                                          # (1, FD) f32, broadcasts over TB
    o_ref[...] = (xi * (inter + r)).astype(o_ref.dtype)     # fused residual epilogue


def _pick_tile_b(batch, row_bytes, target_bytes=4 * 1024 * 1024, min_steps=2):
    """Batch tile: multiple of 8, ~target_bytes per activation buffer, and at
    least `min_steps` grid steps when batch > 8 (keeps both v7x TensorCores
    busy and the input/output DMA pipeline running)."""
    if batch <= 8:
        return int(batch)                     # single full-array block (always legal)
    tb_mem = max(8, (target_bytes // row_bytes) // 8 * 8)
    tb_split = ((pl.cdiv(batch, min_steps) + 7) // 8) * 8
    return int(min(tb_mem, tb_split))


def fi_interaction_layer(interaction_weight, res_weight, V_0, V_i, *, matmul_dtype=None):
    """FIInteractionLayer forward: V_i * (W @ V_0) + res_weight * V_i.

    interaction_weight: [F, F], res_weight: [F, 1], V_0 / V_i: [B, F, D].
    matmul_dtype: dtype of the MXU operands (None -> activation dtype).
    """
    B, F, D = V_0.shape
    assert interaction_weight.shape == (F, F)
    assert res_weight.shape == (F, 1)
    assert V_i.shape == (B, F, D)
    FD = F * D
    act_dtype = V_0.dtype
    out_dtype = V_i.dtype
    if matmul_dtype is None:
        matmul_dtype = act_dtype

    # ---- transpose-free reformulation on the natural [B, F, D] layout ----
    # inter[b, f*D+d] = sum_g W[f, g] * V_0[b, g*D+d]  ==  (V_0_2d @ kron(W.T, I_D))[b, f*D+d]
    kron_w = jnp.kron(interaction_weight.astype(jnp.float32).T,
                      jnp.eye(D, dtype=jnp.float32)).astype(matmul_dtype)
    r_row = jnp.broadcast_to(res_weight.astype(jnp.float32), (F, D)).reshape(1, FD)

    x0 = V_0.reshape(B, FD)       # contiguous reshape: free, no extra HBM pass
    xi = V_i.reshape(B, FD)

    act_isz = jnp.dtype(act_dtype).itemsize
    out_isz = jnp.dtype(out_dtype).itemsize
    mm_isz = jnp.dtype(matmul_dtype).itemsize

    TB = _pick_tile_b(B, FD * act_isz)
    grid = (pl.cdiv(B, TB),)      # ragged tail handled by Pallas masked stores (no jnp.pad)

    # VMEM budget derived from actual usage (double-buffered activations + resident weights).
    act_buf = TB * FD * act_isz
    out_buf = TB * FD * out_isz
    vmem_needed = (2 * (2 * act_buf + out_buf)
                   + 2 * (FD * FD * mm_isz + FD * 4)
                   + (8 << 20))                       # compiler scratch margin
    vmem_limit = int(min(max(vmem_needed, 16 << 20), 48 << 20))

    cost = pl.CostEstimate(
        flops=2 * B * FD * FD + 3 * B * FD,
        bytes_accessed=(2 * B * FD * act_isz + B * FD * out_isz
                        + FD * FD * mm_isz + FD * 4),
        transcendentals=0,
    )

    out_2d = pl.pallas_call(
        _fi_interaction_kernel,
        out_shape=jax.ShapeDtypeStruct((B, FD), out_dtype),
        grid_spec=pl.GridSpec(
            grid=grid,
            in_specs=[
                pl.BlockSpec((FD, FD), lambda i: (0, 0)),   # kron weight, resident
                pl.BlockSpec((1, FD), lambda i: (0, 0)),    # residual row, resident
                pl.BlockSpec((TB, FD), lambda i: (i, 0)),   # V_0 batch tile
                pl.BlockSpec((TB, FD), lambda i: (i, 0)),   # V_i batch tile
            ],
            out_specs=pl.BlockSpec((TB, FD), lambda i: (i, 0)),
        ),
        compiler_params=pltpu.CompilerParams(
            dimension_semantics=("parallel",),   # batch tiles shard across v7x TensorCores
            vmem_limit_bytes=vmem_limit,
        ),
        cost_estimate=cost,
    )(kron_w, r_row, x0, xi)

    return out_2d.reshape(B, F, D)   # contiguous reshape: free


def _reference(interaction_weight, res_weight, V_0, V_i):
    # Pure-JAX reference mirroring the PyTorch forward semantics (f32 math).
    inter = jnp.einsum("fg,bgd->bfd", interaction_weight, V_0)
    return V_i * inter + res_weight[None, :, :] * V_i


if __name__ == "__main__":
    key = jax.random.PRNGKey(0)
    k_w, k_r, k_v0, k_vi, k_v0b, k_vib = jax.random.split(key, 6)

    F, D = 16, 32    # field_num, embedding dim

    # Deterministic xavier_normal_-style initialization.
    std_w = (2.0 / (F + F)) ** 0.5
    std_r = (2.0 / (F + 1)) ** 0.5
    W = std_w * jax.random.normal(k_w, (F, F), dtype=jnp.float32)
    r = std_r * jax.random.normal(k_r, (F, 1), dtype=jnp.float32)

    # ---- case 1: small f32 batch (single-block path) ----
    B = 2
    V_0 = jax.random.normal(k_v0, (B, F, D), dtype=jnp.float32)
    V_i = jax.random.normal(k_vi, (B, F, D), dtype=jnp.float32)
    out = jax.block_until_ready(fi_interaction_layer(W, r, V_0, V_i))
    ref = _reference(W, r, V_0, V_i)
    assert out.shape == (B, F, D)
    assert jnp.allclose(out, ref, atol=2e-2, rtol=2e-2), "f32 path mismatch vs reference"

    # ---- case 2: multi-block ragged batch with bf16 activations (recommended I/O dtype) ----
    B2 = 300   # not a multiple of the batch tile -> exercises the masked partial block
    V_0b = jax.random.normal(k_v0b, (B2, F, D), dtype=jnp.float32).astype(jnp.bfloat16)
    V_ib = jax.random.normal(k_vib, (B2, F, D), dtype=jnp.float32).astype(jnp.bfloat16)
    out_b = jax.block_until_ready(fi_interaction_layer(W, r, V_0b, V_ib))
    ref_b = _reference(W, r, V_0b.astype(jnp.float32), V_ib.astype(jnp.float32))
    assert out_b.shape == (B2, F, D)
    assert out_b.dtype == jnp.bfloat16
    assert jnp.allclose(out_b.astype(jnp.float32), ref_b, atol=1e-1, rtol=5e-2), \
        "bf16 path mismatch vs reference"

    print("KERNEL_OK")
</pallas_src>

<mosaic_0001>
module attributes {stable_mosaic.version = 11 : i64} {
  func.func @_fi_interaction_kernel(%arg0: i32, %arg1: memref<512x512xf32, #tpu.memory_space<vmem>>, %arg2: memref<1x512xf32, #tpu.memory_space<vmem>>, %arg3: memref<2x512xf32, #tpu.memory_space<vmem>>, %arg4: memref<2x512xf32, #tpu.memory_space<vmem>>, %arg5: memref<2x512xf32, #tpu.memory_space<vmem>>) attributes {dimension_semantics = [#tpu.dimension_semantics<parallel>], iteration_bounds = array<i64: 1>, scalar_prefetch = 0 : i64, scratch_operands = 0 : i64, tpu.core_type = #tpu.core_type<tc>, window_params = [{pipeline_mode = #tpu.pipeline_mode<synchronous>, transform_indices = @transform_0, window_bounds = array<i64: 512, 512>}, {pipeline_mode = #tpu.pipeline_mode<synchronous>, transform_indices = @transform_1, window_bounds = array<i64: 1, 512>}, {transform_indices = @transform_2, window_bounds = array<i64: 2, 512>}, {transform_indices = @transform_3, window_bounds = array<i64: 2, 512>}, {transform_indices = @transform_4, window_bounds = array<i64: 2, 512>}]} {
    %c0 = arith.constant 0 : index
    %c0_0 = arith.constant 0 : index
    %0 = vector.load %arg3[%c0, %c0_0] : memref<2x512xf32, #tpu.memory_space<vmem>>, vector<2x512xf32>
    %c0_1 = arith.constant 0 : index
    %c0_2 = arith.constant 0 : index
    %1 = vector.load %arg1[%c0_1, %c0_2] : memref<512x512xf32, #tpu.memory_space<vmem>>, vector<512x512xf32>
    %cst = arith.constant dense<0.000000e+00> : vector<2x512xf32>
    %2 = tpu.matmul %0, %1, %cst {dimension_numbers = #tpu.dot_dimension_numbers<[1], [0], [0], [1], [0, 0, 1, 1], [], []>} : vector<2x512xf32>, vector<512x512xf32>, vector<2x512xf32> -> vector<2x512xf32>
    %c0_3 = arith.constant 0 : index
    %c0_4 = arith.constant 0 : index
    %3 = vector.load %arg4[%c0_3, %c0_4] : memref<2x512xf32, #tpu.memory_space<vmem>>, vector<2x512xf32>
    %c0_5 = arith.constant 0 : index
    %c0_6 = arith.constant 0 : index
    %4 = vector.load %arg2[%c0_5, %c0_6] : memref<1x512xf32, #tpu.memory_space<vmem>>, vector<1x512xf32>
    %5 = vector.broadcast %4 : vector<1x512xf32> to vector<2x512xf32>
    %6 = arith.addf %2, %5 : vector<2x512xf32>
    %7 = arith.mulf %3, %6 : vector<2x512xf32>
    %c0_7 = arith.constant 0 : index
    %c0_8 = arith.constant 0 : index
    %8 = vector.load %arg5[%c0_7, %c0_8] : memref<2x512xf32, #tpu.memory_space<vmem>>, vector<2x512xf32>
    tpu.vector_store %arg5[%c0_7, %c0_8], %7 {strides = array<i32>} : memref<2x512xf32, #tpu.memory_space<vmem>>, vector<2x512xf32>,
    return
  }
  func.func @transform_0(%arg0: i32) -> (i32, i32) {
    %c0_i32 = arith.constant 0 : i32
    %c0_i32_0 = arith.constant 0 : i32
    %c0_i32_1 = arith.constant 0 : i32
    return %c0_i32, %c0_i32_0 : i32, i32
  }
  func.func @transform_1(%arg0: i32) -> (i32, i32) {
    %c0_i32 = arith.constant 0 : i32
    %c0_i32_0 = arith.constant 0 : i32
    %c0_i32_1 = arith.constant 0 : i32
    return %c0_i32, %c0_i32_0 : i32, i32
  }
  func.func @transform_2(%arg0: i32) -> (i32, i32) {
    %c0_i32 = arith.constant 0 : i32
    %c0_i32_0 = arith.constant 0 : i32
    return %arg0, %c0_i32 : i32, i32
  }
  func.func @transform_3(%arg0: i32) -> (i32, i32) {
    %c0_i32 = arith.constant 0 : i32
    %c0_i32_0 = arith.constant 0 : i32
    return %arg0, %c0_i32 : i32, i32
  }
  func.func @transform_4(%arg0: i32) -> (i32, i32) {
    %c0_i32 = arith.constant 0 : i32
    %c0_i32_0 = arith.constant 0 : i32
    return %arg0, %c0_i32 : i32, i32
  }
}

</mosaic_0001>

<llo_original>
// kernel: tpu_custom_call.1
$region0: #{tpu_custom_call.1}
  #allocation0 [shape = 'u32[]', space=smem, size = 0x4, offset = 0x4, fixed_abs, tag = 'smem constant byte address 0x4 - core index']
  #allocation1 [shape = 'u32[72,128]{1,0:T(1,128)}', space=vmem, size = 0x9000, scoped, tag = 'internal scratch']
  %s0 = inlined_call_operand.hbm [shape: f32[512,512], index: 0, kind: input, shape index: {}]
  %s1 = inlined_call_operand.hbm [shape: f32[1,512], index: 1, kind: input, shape index: {}]
  %s2 = inlined_call_operand.hbm [shape: f32[2,512], index: 2, kind: input, shape index: {}]
  %s3 = inlined_call_operand.hbm [shape: f32[2,512], index: 3, kind: input, shape index: {}]
  %s4 = inlined_call_operand.hbm [shape: f32[2,512], index: 4, kind: output, shape index: {}]
  %s5 = sld [smem:[#allocation0]]
  $region42: #{tpu_custom_call.1} parent=0
    _
  %s7 = ssub.s32 1, %s5
  %s8 = scalar_select 0, %s7, %s5
  $region1: #{tpu_custom_call.1} parent=0
    #allocation2 [shape = 'u8[1048576]{0}', space=vmem, size = 0x100000, scoped, tag = 'input window, operand 0, single buffered']
    #allocation3 [shape = 's32[1]{0}', space=sflag, size = 0x4, scoped, tag = 'scoped memory for tpu_custom_call.1']
    #allocation4 [shape = 's32[1]{0}', space=sflag, size = 0x4, scoped, tag = 'scoped memory for tpu_custom_call.1']
    #allocation5 [shape = 'u8[2048]{0}', space=vmem, size = 0x800, scoped, tag = 'input window, operand 1, single buffered']
    #allocation6 [shape = 's32[1]{0}', space=sflag, size = 0x4, scoped, tag = 'scoped memory for tpu_custom_call.1']
    #allocation7 [shape = 'u8[4096]{0}', space=vmem, size = 0x1000, scoped, tag = 'input window, operand 2, single buffered']
    #allocation8 [shape = 'u8[4096]{0}', space=vmem, size = 0x1000, scoped, tag = 'input window, operand 3, single buffered']
    #allocation9 [shape = 's32[1]{0}', space=sflag, size = 0x4, scoped, tag = 'scoped memory for tpu_custom_call.1']
    #allocation10 [shape = 'u8[4096]{0}', space=vmem, size = 0x1000, scoped, tag = 'output window, operand 0, single buffered']
    %9 = vsyncpa [#allocation3], 0
    %10 = vsyncpa [#allocation6], 0
    %11 = vsyncpa [#allocation9], 0
    %12 = vsyncpa [#allocation4], 0
    // Predicated region
    $region2: #{tpu_custom_call.1} parent=1 // pred_check
      _
    $region3: #{tpu_custom_call.1} parent=1 // pred_check_branch
      %14 = sbr.rel (0) target = $region5
    $region4: #{tpu_custom_call.1} parent=1 // pred_region
      %16 = vsyncadd [#allocation3], 0
      %s17 = sshll.u32 %s0, 4
      %s18 = int_to_ptr.hbm [resolvable:$true] %s17
      %s19 = sshll.u32 [#allocation2], 4
      %s20 = int_to_ptr.vmem [resolvable:$true] %s19
      %25 = dma.hbm_to_vmem [thread:$0]  %s18, 32768, %s20, [#allocation3], 512, 512, 32
    $region5: #{tpu_custom_call.1} parent=1 // pred_fallthru
      _
    // Predicated region
    $region6: #{tpu_custom_call.1} parent=1 // pred_check
      _
    $region7: #{tpu_custom_call.1} parent=1 // pred_check_branch
      %27 = sbr.rel (0) target = $region9
    $region8: #{tpu_custom_call.1} parent=1 // pred_region
      %29 = vsyncadd [#allocation6], 0
      %s31 = sshll.u32 %s1, 4
      %s32 = int_to_ptr.hbm [resolvable:$true] %s31
      %s33 = sshll.u32 [#allocation5], 4
      %s34 = int_to_ptr.vmem [resolvable:$true] %s33
      %36 = dma.hbm_to_vmem [thread:$0]  %s32, 64, %s34, [#allocation6]
    $region9: #{tpu_custom_call.1} parent=1 // pred_fallthru
      _
    // Predicated region
    $region10: #{tpu_custom_call.1} parent=1 // pred_check
      _
    $region11: #{tpu_custom_call.1} parent=1 // pred_check_branch
      %38 = sbr.rel (0) target = $region13
    $region12: #{tpu_custom_call.1} parent=1 // pred_region
      %40 = vsyncadd [#allocation6], 0
      %s42 = sshll.u32 %s2, 4
      %s43 = int_to_ptr.hbm [resolvable:$true] %s42
      %s44 = sshll.u32 [#allocation7], 4
      %s45 = int_to_ptr.vmem [resolvable:$true] %s44
      %47 = dma.hbm_to_vmem [thread:$0]  %s43, 128, %s45, [#allocation6]
    $region13: #{tpu_custom_call.1} parent=1 // pred_fallthru
      _
    // Predicated region
    $region14: #{tpu_custom_call.1} parent=1 // pred_check
      _
    $region15: #{tpu_custom_call.1} parent=1 // pred_check_branch
      %49 = sbr.rel (0) target = $region17
    $region16: #{tpu_custom_call.1} parent=1 // pred_region
      %51 = vsyncadd [#allocation9], 0
      %s53 = sshll.u32 %s3, 4
      %s54 = int_to_ptr.hbm [resolvable:$true] %s53
      %s55 = sshll.u32 [#allocation8], 4
      %s56 = int_to_ptr.vmem [resolvable:$true] %s55
      %58 = dma.hbm_to_vmem [thread:$0]  %s54, 128, %s56, [#allocation9]
    $region17: #{tpu_custom_call.1} parent=1 // pred_fallthru
      _
    // Predicated region
    $region18: #{tpu_custom_call.1} parent=1 // pred_check
      _
    $region19: #{tpu_custom_call.1} parent=1 // pred_check_branch
      %60 = sbr.rel (0) target = $region21
    $region20: #{tpu_custom_call.1} parent=1 // pred_region
      %62 = dma.done [#allocation3], 32768
    $region21: #{tpu_custom_call.1} parent=1 // pred_fallthru
      _
    // Predicated region
    $region22: #{tpu_custom_call.1} parent=1 // pred_check
      _
    $region23: #{tpu_custom_call.1} parent=1 // pred_check_branch
      %64 = sbr.rel (0) target = $region25
    $region24: #{tpu_custom_call.1} parent=1 // pred_region
      %66 = dma.done [#allocation6], 64
    $region25: #{tpu_custom_call.1} parent=1 // pred_fallthru
      _
    // Predicated region
    $region26: #{tpu_custom_call.1} parent=1 // pred_check
      _
    $region27: #{tpu_custom_call.1} parent=1 // pred_check_branch
      %68 = sbr.rel (0) target = $region29
    $region28: #{tpu_custom_call.1} parent=1 // pred_region
      %70 = dma.done [#allocation6], 128
    $region29: #{tpu_custom_call.1} parent=1 // pred_fallthru
      _
    // Predicated region
    $region30: #{tpu_custom_call.1} parent=1 // pred_check
      _
    $region31: #{tpu_custom_call.1} parent=1 // pred_check_branch
      %72 = sbr.rel (0) target = $region33
    $region32: #{tpu_custom_call.1} parent=1 // pred_region
      %74 = dma.done [#allocation9], 128
    $region33: #{tpu_custom_call.1} parent=1 // pred_fallthru
      _
    %v75 = vld [vmem:[#allocation7] sm:$0xff]
    %v76 = vld [vmem:[#allocation2] sm:$0xff]
    %v77 = vld [vmem:[#allocation2 + $0x8] sm:$0xff]
    %v78 = vld [vmem:[#allocation2 + $0x10] sm:$0xff]
    %v79 = vld [vmem:[#allocation2 + $0x18] sm:$0xff]
    %v80 = vld [vmem:[#allocation2 + $0x20] sm:$0xff]
    %v81 = vld [vmem:[#allocation2 + $0x28] sm:$0xff]
    %v82 = vld [vmem:[#allocation2 + $0x30] sm:$0xff]
    %v83 = vld [vmem:[#allocation2 + $0x38] sm:$0xff]
    %v84 = vld [vmem:[#allocation2 + $0x40] sm:$0xff]
    %v85 = vld [vmem:[#allocation2 + $0x48] sm:$0xff]
    %v86 = vld [vmem:[#allocation2 + $0x50] sm:$0xff]
    %v87 = vld [vmem:[#allocation2 + $0x58] sm:$0xff]
    %v88 = vld [vmem:[#allocation2 + $0x60] sm:$0xff]
    %v89 = vld [vmem:[#allocation2 + $0x68] sm:$0xff]
    %v90 = vld [vmem:[#allocation2 + $0x70] sm:$0xff]
    %v91 = vld [vmem:[#allocation2 + $0x78] sm:$0xff]
    %v92 = vld [vmem:[#allocation2 + $0x80] sm:$0xff]
    %v93 = vld [vmem:[#allocation2 + $0x88] sm:$0xff]
    %v94 = vld [vmem:[#allocation2 + $0x90] sm:$0xff]
    %v95 = vld [vmem:[#allocation2 + $0x98] sm:$0xff]
    %v96 = vld [vmem:[#allocation2 + $0xa0] sm:$0xff]
    %v97 = vld [vmem:[#allocation2 + $0xa8] sm:$0xff]
    %v98 = vld [vmem:[#allocation2 + $0xb0] sm:$0xff]
    %v99 = vld [vmem:[#allocation2 + $0xb8] sm:$0xff]
    %v100 = vld [vmem:[#allocation2 + $0xc0] sm:$0xff]
    %v101 = vld [vmem:[#allocation2 + $0xc8] sm:$0xff]
    %v102 = vld [vmem:[#allocation2 + $0xd0] sm:$0xff]
    %v103 = vld [vmem:[#allocation2 + $0xd8] sm:$0xff]
    %v104 = vld [vmem:[#allocation2 + $0xe0] sm:$0xff]
    %v105 = vld [vmem:[#allocation2 + $0xe8] sm:$0xff]
    %v106 = vld [vmem:[#allocation2 + $0xf0] sm:$0xff]
    %v107 = vld [vmem:[#allocation2 + $0xf8] sm:$0xff]
    %v108 = vld [vmem:[#allocation2 + $0x100] sm:$0xff]
    %v109 = vld [vmem:[#allocation2 + $0x108] sm:$0xff]
    %v110 = vld [vmem:[#allocation2 + $0x110] sm:$0xff]
    %v111 = vld [vmem:[#allocation2 + $0x118] sm:$0xff]
    %v112 = vld [vmem:[#allocation2 + $0x120] sm:$0xff]
    %v113 = vld [vmem:[#allocation2 + $0x128] sm:$0xff]
    %v114 = vld [vmem:[#allocation2 + $0x130] sm:$0xff]
    %v115 = vld [vmem:[#allocation2 + $0x138] sm:$0xff]
    %v116 = vld [vmem:[#allocation2 + $0x140] sm:$0xff]
    %v117 = vld [vmem:[#allocation2 + $0x148] sm:$0xff]
    %v118 = vld [vmem:[#allocation2 + $0x150] sm:$0xff]
    %v119 = vld [vmem:[#allocation2 + $0x158] sm:$0xff]
    %v120 = vld [vmem:[#allocation2 + $0x160] sm:$0xff]
    %v121 = vld [vmem:[#allocation2 + $0x168] sm:$0xff]
    %v122 = vld [vmem:[#allocation2 + $0x170] sm:$0xff]
    %v123 = vld [vmem:[#allocation2 + $0x178] sm:$0xff]
    %v124 = vld [vmem:[#allocation2 + $0x180] sm:$0xff]
    %v125 = vld [vmem:[#allocation2 + $0x188] sm:$0xff]
    %v126 = vld [vmem:[#allocation2 + $0x190] sm:$0xff]
    %v127 = vld [vmem:[#allocation2 + $0x198] sm:$0xff]
    %v128 = vld [vmem:[#allocation2 + $0x1a0] sm:$0xff]
    %v129 = vld [vmem:[#allocation2 + $0x1a8] sm:$0xff]
    %v130 = vld [vmem:[#allocation2 + $0x1b0] sm:$0xff]
    %v131 = vld [vmem:[#allocation2 + $0x1b8] sm:$0xff]
    %v132 = vld [vmem:[#allocation2 + $0x1c0] sm:$0xff]
    %v133 = vld [vmem:[#allocation2 + $0x1c8] sm:$0xff]
    %v134 = vld [vmem:[#allocation2 + $0x1d0] sm:$0xff]
    %v135 = vld [vmem:[#allocation2 + $0x1d8] sm:$0xff]
    %v136 = vld [vmem:[#allocation2 + $0x1e0] sm:$0xff]
    %v137 = vld [vmem:[#allocation2 + $0x1e8] sm:$0xff]
    %v138 = vld [vmem:[#allocation2 + $0x1f0] sm:$0xff]
    %v139 = vld [vmem:[#allocation2 + $0x1f8] sm:$0xff]
    %v140 = vld [vmem:[#allocation2 + $0x200] sm:$0xff]
    %v141 = vld [vmem:[#allocation2 + $0x208] sm:$0xff]
    %v142 = vld [vmem:[#allocation2 + $0x210] sm:$0xff]
    %v143 = vld [vmem:[#allocation2 + $0x218] sm:$0xff]
    %v144 = vld [vmem:[#allocation2 + $0x220] sm:$0xff]
    %v145 = vld [vmem:[#allocation2 + $0x228] sm:$0xff]
    %v146 = vld [vmem:[#allocation2 + $0x230] sm:$0xff]
    %v147 = vld [vmem:[#allocation2 + $0x238] sm:$0xff]
    %v148 = vld [vmem:[#allocation2 + $0x240] sm:$0xff]
    %v149 = vld [vmem:[#allocation2 + $0x248] sm:$0xff]
    %v150 = vld [vmem:[#allocation2 + $0x250] sm:$0xff]
    %v151 = vld [vmem:[#allocation2 + $0x258] sm:$0xff]
    %v152 = vld [vmem:[#allocation2 + $0x260] sm:$0xff]
    %v153 = vld [vmem:[#allocation2 + $0x268] sm:$0xff]
    %v154 = vld [vmem:[#allocation2 + $0x270] sm:$0xff]
    %v155 = vld [vmem:[#allocation2 + $0x278] sm:$0xff]
    %v156 = vld [vmem:[#allocation2 + $0x280] sm:$0xff]
    %v157 = vld [vmem:[#allocation2 + $0x288] sm:$0xff]
    %v158 = vld [vmem:[#allocation2 + $0x290] sm:$0xff]
    %v159 = vld [vmem:[#allocation2 + $0x298] sm:$0xff]
    %v160 = vld [vmem:[#allocation2 + $0x2a0] sm:$0xff]
    %v161 = vld [vmem:[#allocation2 + $0x2a8] sm:$0xff]
    %v162 = vld [vmem:[#allocation2 + $0x2b0] sm:$0xff]
    %v163 = vld [vmem:[#allocation2 + $0x2b8] sm:$0xff]
    %v164 = vld [vmem:[#allocation2 + $0x2c0] sm:$0xff]
    %v165 = vld [vmem:[#allocation2 + $0x2c8] sm:$0xff]
    %v166 = vld [vmem:[#allocation2 + $0x2d0] sm:$0xff]
    %v167 = vld [vmem:[#allocation2 + $0x2d8] sm:$0xff]
    %v168 = vld [vmem:[#allocation2 + $0x2e0] sm:$0xff]
    %v169 = vld [vmem:[#allocation2 + $0x2e8] sm:$0xff]
    %v170 = vld [vmem:[#allocation2 + $0x2f0] sm:$0xff]
    %v171 = vld [vmem:[#allocation2 + $0x2f8] sm:$0xff]
    %v172 = vld [vmem:[#allocation2 + $0x300] sm:$0xff]
    %v173 = vld [vmem:[#allocation2 + $0x308] sm:$0xff]
    %v174 = vld [vmem:[#allocation2 + $0x310] sm:$0xff]
    %v175 = vld [vmem:[#allocation2 + $0x318] sm:$0xff]
    %v176 = vld [vmem:[#allocation2 + $0x320] sm:$0xff]
    %v177 = vld [vmem:[#allocation2 + $0x328] sm:$0xff]
    %v178 = vld [vmem:[#allocation2 + $0x330] sm:$0xff]
    %v179 = vld [vmem:[#allocation2 + $0x338] sm:$0xff]
    %v180 = vld [vmem:[#allocation2 + $0x340] sm:$0xff]
    %v181 = vld [vmem:[#allocation2 + $0x348] sm:$0xff]
    %v182 = vld [vmem:[#allocation2 + $0x350] sm:$0xff]
    %v183 = vld [vmem:[#allocation2 + $0x358] sm:$0xff]
    %v184 = vld [vmem:[#allocation2 + $0x360] sm:$0xff]
    %v185 = vld [vmem:[#allocation2 + $0x368] sm:$0xff]
    %v186 = vld [vmem:[#allocation2 + $0x370] sm:$0xff]
    %v187 = vld [vmem:[#allocation2 + $0x378] sm:$0xff]
    %v188 = vld [vmem:[#allocation2 + $0x380] sm:$0xff]
    %v189 = vld [vmem:[#allocation2 + $0x388] sm:$0xff]
    %v190 = vld [vmem:[#allocation2 + $0x390] sm:$0xff]
    %v191 = vld [vmem:[#allocation2 + $0x398] sm:$0xff]
    %v192 = vld [vmem:[#allocation2 + $0x3a0] sm:$0xff]
    %v193 = vld [vmem:[#allocation2 + $0x3a8] sm:$0xff]
    %v194 = vld [vmem:[#allocation2 + $0x3b0] sm:$0xff]
    %v195 = vld [vmem:[#allocation2 + $0x3b8] sm:$0xff]
    %v196 = vld [vmem:[#allocation2 + $0x3c0] sm:$0xff]
    %v197 = vld [vmem:[#allocation2 + $0x3c8] sm:$0xff]
    %v198 = vld [vmem:[#allocation2 + $0x3d0] sm:$0xff]
    %v199 = vld [vmem:[#allocation2 + $0x3d8] sm:$0xff]
    %v200 = vld [vmem:[#allocation2 + $0x3e0] sm:$0xff]
    %v201 = vld [vmem:[#allocation2 + $0x3e8] sm:$0xff]
    %v202 = vld [vmem:[#allocation2 + $0x3f0] sm:$0xff]
    %v203 = vld [vmem:[#allocation2 + $0x3f8] sm:$0xff]
    %v204 = vld [vmem:[#allocation2 + $0x400] sm:$0xff]
    %v205 = vld [vmem:[#allocation2 + $0x408] sm:$0xff]
    %v206 = vld [vmem:[#allocation2 + $0x410] sm:$0xff]
    %v207 = vld [vmem:[#allocation2 + $0x418] sm:$0xff]
    %v208 = vld [vmem:[#allocation2 + $0x420] sm:$0xff]
    %v209 = vld [vmem:[#allocation2 + $0x428] sm:$0xff]
    %v210 = vld [vmem:[#allocation2 + $0x430] sm:$0xff]
    %v211 = vld [vmem:[#allocation2 + $0x438] sm:$0xff]
    %v212 = vld [vmem:[#allocation2 + $0x440] sm:$0xff]
    %v213 = vld [vmem:[#allocation2 + $0x448] sm:$0xff]
    %v214 = vld [vmem:[#allocation2 + $0x450] sm:$0xff]
    %v215 = vld [vmem:[#allocation2 + $0x458] sm:$0xff]
    %v216 = vld [vmem:[#allocation2 + $0x460] sm:$0xff]
    %v217 = vld [vmem:[#allocation2 + $0x468] sm:$0xff]
    %v218 = vld [vmem:[#allocation2 + $0x470] sm:$0xff]
    %v219 = vld [vmem:[#allocation2 + $0x478] sm:$0xff]
    %v220 = vld [vmem:[#allocation2 + $0x480] sm:$0xff]
    %v221 = vld [vmem:[#allocation2 + $0x488] sm:$0xff]
    %v222 = vld [vmem:[#allocation2 + $0x490] sm:$0xff]
    %v223 = vld [vmem:[#allocation2 + $0x498] sm:$0xff]
    %v224 = vld [vmem:[#allocation2 + $0x4a0] sm:$0xff]
    %v225 = vld [vmem:[#allocation2 + $0x4a8] sm:$0xff]
    %v226 = vld [vmem:[#allocation2 + $0x4b0] sm:$0xff]
    %v227 = vld [vmem:[#allocation2 + $0x4b8] sm:$0xff]
    %v228 = vld [vmem:[#allocation2 + $0x4c0] sm:$0xff]
    %v229 = vld [vmem:[#allocation2 + $0x4c8] sm:$0xff]
    %v230 = vld [vmem:[#allocation2 + $0x4d0] sm:$0xff]
    %v231 = vld [vmem:[#allocation2 + $0x4d8] sm:$0xff]
    %v232 = vld [vmem:[#allocation2 + $0x4e0] sm:$0xff]
    %v233 = vld [vmem:[#allocation2 + $0x4e8] sm:$0xff]
    %v234 = vld [vmem:[#allocation2 + $0x4f0] sm:$0xff]
    %v235 = vld [vmem:[#allocation2 + $0x4f8] sm:$0xff]
    %v236 = vld [vmem:[#allocation2 + $0x500] sm:$0xff]
    %v237 = vld [vmem:[#allocation2 + $0x508] sm:$0xff]
    %v238 = vld [vmem:[#allocation2 + $0x510] sm:$0xff]
    %v239 = vld [vmem:[#allocation2 + $0x518] sm:$0xff]
    %v240 = vld [vmem:[#allocation2 + $0x520] sm:$0xff]
    %v241 = vld [vmem:[#allocation2 + $0x528] sm:$0xff]
    %v242 = vld [vmem:[#allocation2 + $0x530] sm:$0xff]
    %v243 = vld [vmem:[#allocation2 + $0x538] sm:$0xff]
    %v244 = vld [vmem:[#allocation2 + $0x540] sm:$0xff]
    %v245 = vld [vmem:[#allocation2 + $0x548] sm:$0xff]
    %v246 = vld [vmem:[#allocation2 + $0x550] sm:$0xff]
    %v247 = vld [vmem:[#allocation2 + $0x558] sm:$0xff]
    %v248 = vld [vmem:[#allocation2 + $0x560] sm:$0xff]
    %v249 = vld [vmem:[#allocation2 + $0x568] sm:$0xff]
    %v250 = vld [vmem:[#allocation2 + $0x570] sm:$0xff]
    %v251 = vld [vmem:[#allocation2 + $0x578] sm:$0xff]
    %v252 = vld [vmem:[#allocation2 + $0x580] sm:$0xff]
    %v253 = vld [vmem:[#allocation2 + $0x588] sm:$0xff]
    %v254 = vld [vmem:[#allocation2 + $0x590] sm:$0xff]
    %v255 = vld [vmem:[#allocation2 + $0x598] sm:$0xff]
    %v256 = vld [vmem:[#allocation2 + $0x5a0] sm:$0xff]
    %v257 = vld [vmem:[#allocation2 + $0x5a8] sm:$0xff]
    %v258 = vld [vmem:[#allocation2 + $0x5b0] sm:$0xff]
    %v259 = vld [vmem:[#allocation2 + $0x5b8] sm:$0xff]
    %v260 = vld [vmem:[#allocation2 + $0x5c0] sm:$0xff]
    %v261 = vld [vmem:[#allocation2 + $0x5c8] sm:$0xff]
    %v262 = vld [vmem:[#allocation2 + $0x5d0] sm:$0xff]
    %v263 = vld [vmem:[#allocation2 + $0x5d8] sm:$0xff]
    %v264 = vld [vmem:[#allocation2 + $0x5e0] sm:$0xff]
    %v265 = vld [vmem:[#allocation2 + $0x5e8] sm:$0xff]
    %v266 = vld [vmem:[#allocation2 + $0x5f0] sm:$0xff]
    %v267 = vld [vmem:[#allocation2 + $0x5f8] sm:$0xff]
    %v268 = vld [vmem:[#allocation2 + $0x600] sm:$0xff]
    %v269 = vld [vmem:[#allocation2 + $0x608] sm:$0xff]
    %v270 = vld [vmem:[#allocation2 + $0x610] sm:$0xff]
    %v271 = vld [vmem:[#allocation2 + $0x618] sm:$0xff]
    %v272 = vld [vmem:[#allocation2 + $0x620] sm:$0xff]
    %v273 = vld [vmem:[#allocation2 + $0x628] sm:$0xff]
    %v274 = vld [vmem:[#allocation2 + $0x630] sm:$0xff]
    %v275 = vld [vmem:[#allocation2 + $0x638] sm:$0xff]
    %v276 = vld [vmem:[#allocation2 + $0x640] sm:$0xff]
    %v277 = vld [vmem:[#allocation2 + $0x648] sm:$0xff]
    %v278 = vld [vmem:[#allocation2 + $0x650] sm:$0xff]
    %v279 = vld [vmem:[#allocation2 + $0x658] sm:$0xff]
    %v280 = vld [vmem:[#allocation2 + $0x660] sm:$0xff]
    %v281 = vld [vmem:[#allocation2 + $0x668] sm:$0xff]
    %v282 = vld [vmem:[#allocation2 + $0x670] sm:$0xff]
    %v283 = vld [vmem:[#allocation2 + $0x678] sm:$0xff]
    %v284 = vld [vmem:[#allocation2 + $0x680] sm:$0xff]
    %v285 = vld [vmem:[#allocation2 + $0x688] sm:$0xff]
    %v286 = vld [vmem:[#allocation2 + $0x690] sm:$0xff]
    %v287 = vld [vmem:[#allocation2 + $0x698] sm:$0xff]
    %v288 = vld [vmem:[#allocation2 + $0x6a0] sm:$0xff]
    %v289 = vld [vmem:[#allocation2 + $0x6a8] sm:$0xff]
    %v290 = vld [vmem:[#allocation2 + $0x6b0] sm:$0xff]
    %v291 = vld [vmem:[#allocation2 + $0x6b8] sm:$0xff]
    %v292 = vld [vmem:[#allocation2 + $0x6c0] sm:$0xff]
    %v293 = vld [vmem:[#allocation2 + $0x6c8] sm:$0xff]
    %v294 = vld [vmem:[#allocation2 + $0x6d0] sm:$0xff]
    %v295 = vld [vmem:[#allocation2 + $0x6d8] sm:$0xff]
    %v296 = vld [vmem:[#allocation2 + $0x6e0] sm:$0xff]
    %v297 = vld [vmem:[#allocation2 + $0x6e8] sm:$0xff]
    %v298 = vld [vmem:[#allocation2 + $0x6f0] sm:$0xff]
    %v299 = vld [vmem:[#allocation2 + $0x6f8] sm:$0xff]
    %v300 = vld [vmem:[#allocation2 + $0x700] sm:$0xff]
    %v301 = vld [vmem:[#allocation2 + $0x708] sm:$0xff]
    %v302 = vld [vmem:[#allocation2 + $0x710] sm:$0xff]
    %v303 = vld [vmem:[#allocation2 + $0x718] sm:$0xff]
    %v304 = vld [vmem:[#allocation2 + $0x720] sm:$0xff]
    %v305 = vld [vmem:[#allocation2 + $0x728] sm:$0xff]
    %v306 = vld [vmem:[#allocation2 + $0x730] sm:$0xff]
    %v307 = vld [vmem:[#allocation2 + $0x738] sm:$0xff]
    %v308 = vld [vmem:[#allocation2 + $0x740] sm:$0xff]
    %v309 = vld [vmem:[#allocation2 + $0x748] sm:$0xff]
    %v310 = vld [vmem:[#allocation2 + $0x750] sm:$0xff]
    %v311 = vld [vmem:[#allocation2 + $0x758] sm:$0xff]
    %v312 = vld [vmem:[#allocation2 + $0x760] sm:$0xff]
    %v313 = vld [vmem:[#allocation2 + $0x768] sm:$0xff]
    %v314 = vld [vmem:[#allocation2 + $0x770] sm:$0xff]
    %v315 = vld [vmem:[#allocation2 + $0x778] sm:$0xff]
    %v316 = vld [vmem:[#allocation2 + $0x780] sm:$0xff]
    %v317 = vld [vmem:[#allocation2 + $0x788] sm:$0xff]
    %v318 = vld [vmem:[#allocation2 + $0x790] sm:$0xff]
    %v319 = vld [vmem:[#allocation2 + $0x798] sm:$0xff]
    %v320 = vld [vmem:[#allocation2 + $0x7a0] sm:$0xff]
    %v321 = vld [vmem:[#allocation2 + $0x7a8] sm:$0xff]
    %v322 = vld [vmem:[#allocation2 + $0x7b0] sm:$0xff]
    %v323 = vld [vmem:[#allocation2 + $0x7b8] sm:$0xff]
    %v324 = vld [vmem:[#allocation2 + $0x7c0] sm:$0xff]
    %v325 = vld [vmem:[#allocation2 + $0x7c8] sm:$0xff]
    %v326 = vld [vmem:[#allocation2 + $0x7d0] sm:$0xff]
    %v327 = vld [vmem:[#allocation2 + $0x7d8] sm:$0xff]
    %v328 = vld [vmem:[#allocation2 + $0x7e0] sm:$0xff]
    %v329 = vld [vmem:[#allocation2 + $0x7e8] sm:$0xff]
    %v330 = vld [vmem:[#allocation2 + $0x7f0] sm:$0xff]
    %v331 = vld [vmem:[#allocation2 + $0x7f8] sm:$0xff]
    %v332 = vld [vmem:[#allocation8] sm:$0xff]
    %v333 = vld [vmem:[#allocation5] sm:$0xf]
    %v335 = vperm.slane %v333, 0
    %v336 = vperm.slane %v333, 1
    %v337 = vperm.slane %v333, 2
    %v338 = vperm.slane %v333, 3
    %344 = vst [vmem:[#allocation1] ss:$4 sm:$0xff] %v75
    %v345 = vld.sshfl [vmem:[#allocation1] sm:$0xff pattern:$0x73625140]
    %v346 = vld.sshfl [vmem:[#allocation1 + $0x8] sm:$0xff pattern:$0x73625140]
    %v347 = vld.sshfl [vmem:[#allocation1 + $0x10] sm:$0xff pattern:$0x73625140]
    %v348 = vld.sshfl [vmem:[#allocation1 + $0x18] sm:$0xff pattern:$0x73625140]
    %353 = vmatpush.msra.mxu0 %v136
    %354 = vmatpush.msra.mxu0 %v132
    %355 = vmatpush.msra.mxu0 %v128
    %356 = vmatpush.msra.mxu0 %v124
    %357 = vmatpush.msra.mxu0 %v120
    %358 = vmatpush.msra.mxu0 %v116
    %359 = vmatpush.msra.mxu0 %v112
    %360 = vmatpush.msra.mxu0 %v108
    %361 = vmatpush.msra.mxu0 %v104
    %362 = vmatpush.msra.mxu0 %v100
    %363 = vmatpush.msra.mxu0 %v96
    %364 = vmatpush.msra.mxu0 %v92
    %365 = vmatpush.msra.mxu0 %v88
    %366 = vmatpush.msra.mxu0 %v84
    %367 = vmatpush.msra.mxu0 %v80
    %368 = vmatpush.msra.mxu0 %v76
    %369 = vmatmul.f32.gmra.mxu0 %v345
    %v370 = vpop.f32.mrf.mxu0
    %v371 = vadd.f32 %v335, %v370
    %372 = vdwg.mxu0
    %373 = vmatpush.msra.mxu0 %v200
    %374 = vmatpush.msra.mxu0 %v196
    %375 = vmatpush.msra.mxu0 %v192
    %376 = vmatpush.msra.mxu0 %v188
    %377 = vmatpush.msra.mxu0 %v184
    %378 = vmatpush.msra.mxu0 %v180
    %379 = vmatpush.msra.mxu0 %v176
    %380 = vmatpush.msra.mxu0 %v172
    %381 = vmatpush.msra.mxu0 %v168
    %382 = vmatpush.msra.mxu0 %v164
    %383 = vmatpush.msra.mxu0 %v160
    %384 = vmatpush.msra.mxu0 %v156
    %385 = vmatpush.msra.mxu0 %v152
    %386 = vmatpush.msra.mxu0 %v148
    %387 = vmatpush.msra.mxu0 %v144
    %388 = vmatpush.msra.mxu0 %v140
    %389 = vmatmul.f32.gmra.mxu0 %v346
    %v390 = vpop.f32.mrf.mxu0
    %v391 = vadd.f32 %v371, %v390
    %392 = vdwg.mxu0
    %393 = vmatpush.msra.mxu0 %v264
    %394 = vmatpush.msra.mxu0 %v260
    %395 = vmatpush.msra.mxu0 %v256
    %396 = vmatpush.msra.mxu0 %v252
    %397 = vmatpush.msra.mxu0 %v248
    %398 = vmatpush.msra.mxu0 %v244
    %399 = vmatpush.msra.mxu0 %v240
    %400 = vmatpush.msra.mxu0 %v236
    %401 = vmatpush.msra.mxu0 %v232
    %402 = vmatpush.msra.mxu0 %v228
    %403 = vmatpush.msra.mxu0 %v224
    %404 = vmatpush.msra.mxu0 %v220
    %405 = vmatpush.msra.mxu0 %v216
    %406 = vmatpush.msra.mxu0 %v212
    %407 = vmatpush.msra.mxu0 %v208
    %408 = vmatpush.msra.mxu0 %v204
    %409 = vmatmul.f32.gmra.mxu0 %v347
    %v410 = vpop.f32.mrf.mxu0
    %v411 = vadd.f32 %v391, %v410
    %412 = vdwg.mxu0
    %413 = vmatpush.msra.mxu0 %v328
    %414 = vmatpush.msra.mxu0 %v324
    %415 = vmatpush.msra.mxu0 %v320
    %416 = vmatpush.msra.mxu0 %v316
    %417 = vmatpush.msra.mxu0 %v312
    %418 = vmatpush.msra.mxu0 %v308
    %419 = vmatpush.msra.mxu0 %v304
    %420 = vmatpush.msra.mxu0 %v300
    %421 = vmatpush.msra.mxu0 %v296
    %422 = vmatpush.msra.mxu0 %v292
    %423 = vmatpush.msra.mxu0 %v288
    %424 = vmatpush.msra.mxu0 %v284
    %425 = vmatpush.msra.mxu0 %v280
    %426 = vmatpush.msra.mxu0 %v276
    %427 = vmatpush.msra.mxu0 %v272
    %428 = vmatpush.msra.mxu0 %v268
    %429 = vmatmul.f32.gmra.mxu0 %v348
    %v430 = vpop.f32.mrf.mxu0
    %v431 = vadd.f32 %v411, %v430
    %432 = vdwg.mxu0
    %433 = vmatpush.msra.mxu0 %v137
    %434 = vmatpush.msra.mxu0 %v133
    %435 = vmatpush.msra.mxu0 %v129
    %436 = vmatpush.msra.mxu0 %v125
    %437 = vmatpush.msra.mxu0 %v121
    %438 = vmatpush.msra.mxu0 %v117
    %439 = vmatpush.msra.mxu0 %v113
    %440 = vmatpush.msra.mxu0 %v109
    %441 = vmatpush.msra.mxu0 %v105
    %442 = vmatpush.msra.mxu0 %v101
    %443 = vmatpush.msra.mxu0 %v97
    %444 = vmatpush.msra.mxu0 %v93
    %445 = vmatpush.msra.mxu0 %v89
    %446 = vmatpush.msra.mxu0 %v85
    %447 = vmatpush.msra.mxu0 %v81
    %448 = vmatpush.msra.mxu0 %v77
    %449 = vmatmul.f32.gmra.mxu0 %v345
    %v450 = vpop.f32.mrf.mxu0
    %v451 = vadd.f32 %v336, %v450
    %452 = vdwg.mxu0
    %453 = vmatpush.msra.mxu0 %v201
    %454 = vmatpush.msra.mxu0 %v197
    %455 = vmatpush.msra.mxu0 %v193
    %456 = vmatpush.msra.mxu0 %v189
    %457 = vmatpush.msra.mxu0 %v185
    %458 = vmatpush.msra.mxu0 %v181
    %459 = vmatpush.msra.mxu0 %v177
    %460 = vmatpush.msra.mxu0 %v173
    %461 = vmatpush.msra.mxu0 %v169
    %462 = vmatpush.msra.mxu0 %v165
    %463 = vmatpush.msra.mxu0 %v161
    %464 = vmatpush.msra.mxu0 %v157
    %465 = vmatpush.msra.mxu0 %v153
    %466 = vmatpush.msra.mxu0 %v149
    %467 = vmatpush.msra.mxu0 %v145
    %468 = vmatpush.msra.mxu0 %v141
    %469 = vmatmul.f32.gmra.mxu0 %v346
    %v470 = vpop.f32.mrf.mxu0
    %v471 = vadd.f32 %v451, %v470
    %472 = vdwg.mxu0
    %473 = vmatpush.msra.mxu0 %v265
    %474 = vmatpush.msra.mxu0 %v261
    %475 = vmatpush.msra.mxu0 %v257
    %476 = vmatpush.msra.mxu0 %v253
    %477 = vmatpush.msra.mxu0 %v249
    %478 = vmatpush.msra.mxu0 %v245
    %479 = vmatpush.msra.mxu0 %v241
    %480 = vmatpush.msra.mxu0 %v237
    %481 = vmatpush.msra.mxu0 %v233
    %482 = vmatpush.msra.mxu0 %v229
    %483 = vmatpush.msra.mxu0 %v225
    %484 = vmatpush.msra.mxu0 %v221
    %485 = vmatpush.msra.mxu0 %v217
    %486 = vmatpush.msra.mxu0 %v213
    %487 = vmatpush.msra.mxu0 %v209
    %488 = vmatpush.msra.mxu0 %v205
    %489 = vmatmul.f32.gmra.mxu0 %v347
    %v490 = vpop.f32.mrf.mxu0
    %v491 = vadd.f32 %v471, %v490
    %492 = vdwg.mxu0
    %493 = vmatpush.msra.mxu0 %v329
    %494 = vmatpush.msra.mxu0 %v325
    %495 = vmatpush.msra.mxu0 %v321
    %496 = vmatpush.msra.mxu0 %v317
    %497 = vmatpush.msra.mxu0 %v313
    %498 = vmatpush.msra.mxu0 %v309
    %499 = vmatpush.msra.mxu0 %v305
    %500 = vmatpush.msra.mxu0 %v301
    %501 = vmatpush.msra.mxu0 %v297
    %502 = vmatpush.msra.mxu0 %v293
    %503 = vmatpush.msra.mxu0 %v289
    %504 = vmatpush.msra.mxu0 %v285
    %505 = vmatpush.msra.mxu0 %v281
    %506 = vmatpush.msra.mxu0 %v277
    %507 = vmatpush.msra.mxu0 %v273
    %508 = vmatpush.msra.mxu0 %v269
    %509 = vmatmul.f32.gmra.mxu0 %v348
    %v510 = vpop.f32.mrf.mxu0
    %v511 = vadd.f32 %v491, %v510
    %512 = vdwg.mxu0
    %513 = vmatpush.msra.mxu0 %v138
    %514 = vmatpush.msra.mxu0 %v134
    %515 = vmatpush.msra.mxu0 %v130
    %516 = vmatpush.msra.mxu0 %v126
    %517 = vmatpush.msra.mxu0 %v122
    %518 = vmatpush.msra.mxu0 %v118
    %519 = vmatpush.msra.mxu0 %v114
    %520 = vmatpush.msra.mxu0 %v110
    %521 = vmatpush.msra.mxu0 %v106
    %522 = vmatpush.msra.mxu0 %v102
    %523 = vmatpush.msra.mxu0 %v98
    %524 = vmatpush.msra.mxu0 %v94
    %525 = vmatpush.msra.mxu0 %v90
    %526 = vmatpush.msra.mxu0 %v86
    %527 = vmatpush.msra.mxu0 %v82
    %528 = vmatpush.msra.mxu0 %v78
    %529 = vmatmul.f32.gmra.mxu0 %v345
    %v530 = vpop.f32.mrf.mxu0
    %v531 = vadd.f32 %v337, %v530
    %532 = vdwg.mxu0
    %533 = vmatpush.msra.mxu0 %v202
    %534 = vmatpush.msra.mxu0 %v198
    %535 = vmatpush.msra.mxu0 %v194
    %536 = vmatpush.msra.mxu0 %v190
    %537 = vmatpush.msra.mxu0 %v186
    %538 = vmatpush.msra.mxu0 %v182
    %539 = vmatpush.msra.mxu0 %v178
    %540 = vmatpush.msra.mxu0 %v174
    %541 = vmatpush.msra.mxu0 %v170
    %542 = vmatpush.msra.mxu0 %v166
    %543 = vmatpush.msra.mxu0 %v162
    %544 = vmatpush.msra.mxu0 %v158
    %545 = vmatpush.msra.mxu0 %v154
    %546 = vmatpush.msra.mxu0 %v150
    %547 = vmatpush.msra.mxu0 %v146
    %548 = vmatpush.msra.mxu0 %v142
    %549 = vmatmul.f32.gmra.mxu0 %v346
    %v550 = vpop.f32.mrf.mxu0
    %v551 = vadd.f32 %v531, %v550
    %552 = vdwg.mxu0
    %553 = vmatpush.msra.mxu0 %v266
    %554 = vmatpush.msra.mxu0 %v262
    %555 = vmatpush.msra.mxu0 %v258
    %556 = vmatpush.msra.mxu0 %v254
    %557 = vmatpush.msra.mxu0 %v250
    %558 = vmatpush.msra.mxu0 %v246
    %559 = vmatpush.msra.mxu0 %v242
    %560 = vmatpush.msra.mxu0 %v238
    %561 = vmatpush.msra.mxu0 %v234
    %562 = vmatpush.msra.mxu0 %v230
    %563 = vmatpush.msra.mxu0 %v226
    %564 = vmatpush.msra.mxu0 %v222
    %565 = vmatpush.msra.mxu0 %v218
    %566 = vmatpush.msra.mxu0 %v214
    %567 = vmatpush.msra.mxu0 %v210
    %568 = vmatpush.msra.mxu0 %v206
    %569 = vmatmul.f32.gmra.mxu0 %v347
    %v570 = vpop.f32.mrf.mxu0
    %v571 = vadd.f32 %v551, %v570
    %572 = vdwg.mxu0
    %573 = vmatpush.msra.mxu0 %v330
    %574 = vmatpush.msra.mxu0 %v326
    %575 = vmatpush.msra.mxu0 %v322
    %576 = vmatpush.msra.mxu0 %v318
    %577 = vmatpush.msra.mxu0 %v314
    %578 = vmatpush.msra.mxu0 %v310
    %579 = vmatpush.msra.mxu0 %v306
    %580 = vmatpush.msra.mxu0 %v302
    %581 = vmatpush.msra.mxu0 %v298
    %582 = vmatpush.msra.mxu0 %v294
    %583 = vmatpush.msra.mxu0 %v290
    %584 = vmatpush.msra.mxu0 %v286
    %585 = vmatpush.msra.mxu0 %v282
    %586 = vmatpush.msra.mxu0 %v278
    %587 = vmatpush.msra.mxu0 %v274
    %588 = vmatpush.msra.mxu0 %v270
    %589 = vmatmul.f32.gmra.mxu0 %v348
    %v590 = vpop.f32.mrf.mxu0
    %v591 = vadd.f32 %v571, %v590
    %592 = vdwg.mxu0
    %593 = vmatpush.msra.mxu0 %v139
    %594 = vmatpush.msra.mxu0 %v135
    %595 = vmatpush.msra.mxu0 %v131
    %596 = vmatpush.msra.mxu0 %v127
    %597 = vmatpush.msra.mxu0 %v123
    %598 = vmatpush.msra.mxu0 %v119
    %599 = vmatpush.msra.mxu0 %v115
    %600 = vmatpush.msra.mxu0 %v111
    %601 = vmatpush.msra.mxu0 %v107
    %602 = vmatpush.msra.mxu0 %v103
    %603 = vmatpush.msra.mxu0 %v99
    %604 = vmatpush.msra.mxu0 %v95
    %605 = vmatpush.msra.mxu0 %v91
    %606 = vmatpush.msra.mxu0 %v87
    %607 = vmatpush.msra.mxu0 %v83
    %608 = vmatpush.msra.mxu0 %v79
    %609 = vmatmul.f32.gmra.mxu0 %v345
    %v610 = vpop.f32.mrf.mxu0
    %v611 = vadd.f32 %v338, %v610
    %612 = vdwg.mxu0
    %613 = vmatpush.msra.mxu0 %v203
    %614 = vmatpush.msra.mxu0 %v199
    %615 = vmatpush.msra.mxu0 %v195
    %616 = vmatpush.msra.mxu0 %v191
    %617 = vmatpush.msra.mxu0 %v187
    %618 = vmatpush.msra.mxu0 %v183
    %619 = vmatpush.msra.mxu0 %v179
    %620 = vmatpush.msra.mxu0 %v175
    %621 = vmatpush.msra.mxu0 %v171
    %622 = vmatpush.msra.mxu0 %v167
    %623 = vmatpush.msra.mxu0 %v163
    %624 = vmatpush.msra.mxu0 %v159
    %625 = vmatpush.msra.mxu0 %v155
    %626 = vmatpush.msra.mxu0 %v151
    %627 = vmatpush.msra.mxu0 %v147
    %628 = vmatpush.msra.mxu0 %v143
    %629 = vmatmul.f32.gmra.mxu0 %v346
    %v630 = vpop.f32.mrf.mxu0
    %v631 = vadd.f32 %v611, %v630
    %632 = vdwg.mxu0
    %633 = vmatpush.msra.mxu0 %v267
    %634 = vmatpush.msra.mxu0 %v263
    %635 = vmatpush.msra.mxu0 %v259
    %636 = vmatpush.msra.mxu0 %v255
    %637 = vmatpush.msra.mxu0 %v251
    %638 = vmatpush.msra.mxu0 %v247
    %639 = vmatpush.msra.mxu0 %v243
    %640 = vmatpush.msra.mxu0 %v239
    %641 = vmatpush.msra.mxu0 %v235
    %642 = vmatpush.msra.mxu0 %v231
    %643 = vmatpush.msra.mxu0 %v227
    %644 = vmatpush.msra.mxu0 %v223
    %645 = vmatpush.msra.mxu0 %v219
    %646 = vmatpush.msra.mxu0 %v215
    %647 = vmatpush.msra.mxu0 %v211
    %648 = vmatpush.msra.mxu0 %v207
    %649 = vmatmul.f32.gmra.mxu0 %v347
    %v650 = vpop.f32.mrf.mxu0
    %v651 = vadd.f32 %v631, %v650
    %652 = vdwg.mxu0
    %653 = vmatpush.msra.mxu0 %v331
    %654 = vmatpush.msra.mxu0 %v327
    %655 = vmatpush.msra.mxu0 %v323
    %656 = vmatpush.msra.mxu0 %v319
    %657 = vmatpush.msra.mxu0 %v315
    %658 = vmatpush.msra.mxu0 %v311
    %659 = vmatpush.msra.mxu0 %v307
    %660 = vmatpush.msra.mxu0 %v303
    %661 = vmatpush.msra.mxu0 %v299
    %662 = vmatpush.msra.mxu0 %v295
    %663 = vmatpush.msra.mxu0 %v291
    %664 = vmatpush.msra.mxu0 %v287
    %665 = vmatpush.msra.mxu0 %v283
    %666 = vmatpush.msra.mxu0 %v279
    %667 = vmatpush.msra.mxu0 %v275
    %668 = vmatpush.msra.mxu0 %v271
    %669 = vmatmul.f32.gmra.mxu0 %v348
    %v670 = vpop.f32.mrf.mxu0
    %v671 = vadd.f32 %v651, %v670
    %672 = vdwg.mxu0
    %v677 = vrot.slane %v511, 6
    %v678 = vrot.slane %v591, 4
    %v679 = vrot.slane %v671, 2
    %vm680 = vcmask 1041408
    %v681 = vsel %vm680, %v431, %v677
    %vm682 = vcmask 1045508
    %v683 = vsel %vm682, %v678, %v679
    %vm684 = vcmask 1043456
    %v685 = vsel %vm684, %v681, %v683
    %v687 = vmul.f32 %v332, %v685
    %688 = vst [vmem:[#allocation10] sm:$0xff] %v687
    // Predicated region
    $region34: #{tpu_custom_call.1} parent=1 // pred_check
      _
    $region35: #{tpu_custom_call.1} parent=1 // pred_check_branch
      %690 = sbr.rel (0) target = $region37
    $region36: #{tpu_custom_call.1} parent=1 // pred_region
      %692 = vsyncadd [#allocation4], 0
      %s694 = sshll.u32 [#allocation10], 4
      %s695 = int_to_ptr.vmem [resolvable:$true] %s694
      %s696 = sshll.u32 %s4, 4
      %s697 = int_to_ptr.hbm [resolvable:$true] %s696
      %699 = dma.vmem_to_hbm [thread:$0]  %s695, 128, %s697, [#allocation4]
    $region37: #{tpu_custom_call.1} parent=1 // pred_fallthru
      _
    // Predicated region
    $region38: #{tpu_custom_call.1} parent=1 // pred_check
      _
    $region39: #{tpu_custom_call.1} parent=1 // pred_check_branch
      %701 = sbr.rel (0) target = $region41
    $region40: #{tpu_custom_call.1} parent=1 // pred_region
      %703 = dma.done [#allocation4], 128
    $region41: #{tpu_custom_call.1} parent=1 // pred_fallthru
      _
    %704 = vsyncpa [#allocation3], 1
    %705 = vsyncpa [#allocation6], 1
    %706 = vsyncpa [#allocation9], 1
    %707 = vsyncpa [#allocation4], 1

</llo_original>
